<compile_context>
chip_gen: v7x
topology: tpu7x:2x2x1
jax: 0.10.0
libtpu: 0.0.40
codegen_flags: <defaults>
</compile_context>

<pallas_src>
import math

import jax
import jax.numpy as jnp
from jax import lax
from jax.experimental import pallas as pl
from jax.experimental.pallas import tpu as pltpu


# PyTorch concat order x0..x7 in terms of (dh, dw, dt) offsets:
#   x0=(0,0,0) x1=(1,0,0) x2=(0,1,0) x3=(0,0,1) x4=(1,1,0) x5=(0,1,1) x6=(1,0,1) x7=(1,1,1)
# Natural (lexicographic) chunk n = dh*4 + dw*2 + dt  ->  torch chunk index:
_TORCH_OF_NATURAL = (0, 3, 2, 5, 1, 6, 4, 7)


# --------------------------------------------------------------------------
# Fused kernel: 2x2x2 gather + LayerNorm(8C) + Linear(8C -> Cout, bias folded)
# --------------------------------------------------------------------------
def _pm_kernel(x00_ref, x01_ref, x10_ref, x11_ref, w_ref, b_ref, o_ref):
    """x??_ref: (bW2, T2, 2C) raw tokens for (dh, dw) = (0,0),(0,1),(1,0),(1,1)
    w_ref   : (4, 2C, Cout)  bf16  gamma-folded, permuted reduction weight
    b_ref   : (1, Cout)      f32   beta-folded bias
    o_ref   : (bW2, T2, Cout)
    """
    refs = (x00_ref, x01_ref, x10_ref, x11_ref)
    bw2, t2, c2 = x00_ref.shape
    cout = o_ref.shape[-1]
    inv_n = 1.0 / (4 * c2)          # 1 / (8*C)

    def body(j, carry):
        xs = [r[j].astype(jnp.float32) for r in refs]                      # 4 x (T2, 2C)
        # One-pass LayerNorm statistics over the (virtual) 8C axis.
        s = sum(jnp.sum(xi, axis=-1, keepdims=True) for xi in xs)          # (T2, 1)
        ss = sum(jnp.sum(xi * xi, axis=-1, keepdims=True) for xi in xs)    # (T2, 1)
        mu = s * inv_n
        var = jnp.maximum(ss * inv_n - mu * mu, 0.0)
        rstd = lax.rsqrt(var + 1e-5)
        # K-split matmul over the four 2C chunks (bf16 MXU, f32 accumulate).
        acc = jnp.zeros((t2, cout), jnp.float32)
        for n in range(4):
            y = ((xs[n] - mu) * rstd).astype(jnp.bfloat16)
            acc = acc + jnp.dot(y, w_ref[n], preferred_element_type=jnp.float32)
        o_ref[j] = (acc + b_ref[...]).astype(o_ref.dtype)
        return carry

    lax.fori_loop(0, bw2, body, 0)


# --------------------------------------------------------------------------
# PatchMerging forward
# --------------------------------------------------------------------------
def patch_merging(x, H, W, T, params, *, out_dtype=None,
                  vmem_budget=12 * 1024 * 1024):
    """PatchMerging.forward.

    x: (B, H*W*T, C) tokens.
    params:
      'norm_g', 'norm_b' : (8C,)        LayerNorm weight / bias (torch order)
      'reduction_w'      : (Cout, 8C)   nn.Linear weight (torch layout, no bias)
    Returns (B, H/2*W/2*T/2, Cout).
    """
    B, L, C = x.shape
    assert L == H * W * T, "input feature has wrong size"
    assert H % 2 == 0 and W % 2 == 0 and T % 2 == 0, "H/W/T must be even"
    H2, W2, T2 = H // 2, W // 2, T // 2
    C2, C8 = 2 * C, 8 * C
    out_dtype = x.dtype if out_dtype is None else out_dtype

    gamma = params['norm_g'].astype(jnp.float32)
    beta = params['norm_b'].astype(jnp.float32)
    w_t = params['reduction_w'].astype(jnp.float32).T            # (8C, Cout)
    Cout = w_t.shape[1]

    # Permute affine params / weight rows from the torch concat order into the
    # natural (dh, dw, dt)-lexicographic order produced by the BlockSpec
    # gather (LN stats are permutation invariant), then fold the LN affine
    # into the weight/bias.
    perm = jnp.concatenate(
        [jnp.arange(C, dtype=jnp.int32) + j * C for j in _TORCH_OF_NATURAL])
    w_perm = w_t[perm]                                            # (8C, Cout) f32
    w_fold = (gamma[perm][:, None] * w_perm).astype(jnp.bfloat16).reshape(4, C2, Cout)
    bias = (beta[perm] @ w_perm).reshape(1, Cout).astype(jnp.float32)

    # Free reshape: (B, H*W*T, C) -> (B, H2, 2, W2, 2, T2, 2C).  The stride-2
    # gather becomes four BlockSpec views; activation is read from HBM once.
    xr = x.reshape(B, H2, 2, W2, 2, T2, C2)

    # Pick bW2 = largest divisor of W2 whose double-buffered working set fits
    # the VMEM budget (keeps v5e's 16 MiB scoped default / v7x's VMEM safe).
    in_isz = x.dtype.itemsize
    out_isz = jnp.dtype(out_dtype).itemsize
    w_bytes = 4 * C2 * Cout * 2 + Cout * 4
    bW2 = 1
    for d in range(1, W2 + 1):
        if W2 % d:
            continue
        step_bytes = 2 * d * T2 * (4 * C2 * in_isz + Cout * out_isz) + w_bytes
        if step_bytes <= vmem_budget:
            bW2 = d
    grid = (B, H2, W2 // bW2)

    def in_spec(dh, dw):
        return pl.BlockSpec(
            (None, None, None, bW2, None, T2, C2),
            lambda b, i, j, dh=dh, dw=dw: (b, i, dh, j, dw, 0, 0))

    M = B * H2 * W2 * T2
    cost = pl.CostEstimate(
        flops=2 * M * C8 * Cout,
        transcendentals=M,
        bytes_accessed=M * C8 * in_isz + M * Cout * out_isz + w_bytes)

    out = pl.pallas_call(
        _pm_kernel,
        out_shape=jax.ShapeDtypeStruct((B, H2, W2, T2, Cout), out_dtype),
        grid=grid,
        in_specs=[in_spec(0, 0), in_spec(0, 1), in_spec(1, 0), in_spec(1, 1),
                  pl.BlockSpec((4, C2, Cout), lambda b, i, j: (0, 0, 0)),
                  pl.BlockSpec((1, Cout), lambda b, i, j: (0, 0))],
        out_specs=pl.BlockSpec((None, None, bW2, T2, Cout),
                               lambda b, i, j: (b, i, j, 0, 0)),
        compiler_params=pltpu.CompilerParams(
            dimension_semantics=("parallel", "parallel", "parallel")),
        cost_estimate=cost,
    )(xr, xr, xr, xr, w_fold, bias)

    return out.reshape(B, H2 * W2 * T2, Cout)       # free reshape (row-major)


# --------------------------------------------------------------------------
# Pure-JAX reference mirroring the PyTorch module literally (for validation)
# --------------------------------------------------------------------------
def patch_merging_reference(x, H, W, T, params):
    B, L, C = x.shape
    xr = x.reshape(B, H, W, T, C)
    x0 = xr[:, 0::2, 0::2, 0::2, :]
    x1 = xr[:, 1::2, 0::2, 0::2, :]
    x2 = xr[:, 0::2, 1::2, 0::2, :]
    x3 = xr[:, 0::2, 0::2, 1::2, :]
    x4 = xr[:, 1::2, 1::2, 0::2, :]
    x5 = xr[:, 0::2, 1::2, 1::2, :]
    x6 = xr[:, 1::2, 0::2, 1::2, :]
    x7 = xr[:, 1::2, 1::2, 1::2, :]
    xc = jnp.concatenate([x0, x1, x2, x3, x4, x5, x6, x7], axis=-1).reshape(B, -1, 8 * C)
    mu = jnp.mean(xc, axis=-1, keepdims=True)
    var = jnp.mean((xc - mu) ** 2, axis=-1, keepdims=True)
    y = (xc - mu) * lax.rsqrt(var + 1e-5)
    y = y * params['norm_g'] + params['norm_b']
    return jnp.einsum('blk,ok->blo', y, params['reduction_w'])


# --------------------------------------------------------------------------
# Deterministic parameter init (matches nn.LayerNorm / nn.Linear shapes)
# --------------------------------------------------------------------------
def init_patch_merging_params(key, dim, reduce_factor=2):
    out_dim = (8 // reduce_factor) * dim
    k1, k2, k3 = jax.random.split(key, 3)
    bound = 1.0 / math.sqrt(8 * dim)
    weight = jax.random.uniform(k1, (out_dim, 8 * dim), jnp.float32, -bound, bound)
    gamma = 1.0 + 0.02 * jax.random.normal(k2, (8 * dim,), jnp.float32)
    beta = 0.02 * jax.random.normal(k3, (8 * dim,), jnp.float32)
    return {'reduction_w': weight, 'norm_g': gamma, 'norm_b': beta}


if __name__ == "__main__":
    key = jax.random.PRNGKey(0)
    kx, kp = jax.random.split(key)

    B, dim = 2, 32                       # 8C = 256, Cout = 4*dim = 128 (lane-dense)
    H = W = T = 8
    L = H * W * T

    x = jax.random.normal(kx, (B, L, dim), jnp.float32)
    params = init_patch_merging_params(kp, dim, reduce_factor=2)

    fwd = jax.jit(lambda xx, pp: patch_merging(xx, H, W, T, pp))
    out = fwd(x, params)
    jax.block_until_ready(out)

    assert out.shape == (B, L // 8, 4 * dim)
    assert bool(jnp.all(jnp.isfinite(out)))

    ref = patch_merging_reference(x, H, W, T, params)
    err = float(jnp.max(jnp.abs(out - ref)))
    assert err < 5e-2, f"max abs error vs reference: {err}"

    print("KERNEL_OK")
</pallas_src>

<mosaic_0001>
module attributes {stable_mosaic.version = 11 : i64} {
  func.func @_pm_kernel(%arg0: i32, %arg1: i32, %arg2: i32, %arg3: memref<1x1x1x4x1x4x64xf32, #tpu.memory_space<vmem>>, %arg4: memref<1x1x1x4x1x4x64xf32, #tpu.memory_space<vmem>>, %arg5: memref<1x1x1x4x1x4x64xf32, #tpu.memory_space<vmem>>, %arg6: memref<1x1x1x4x1x4x64xf32, #tpu.memory_space<vmem>>, %arg7: memref<4x64x128xbf16, #tpu.memory_space<vmem>>, %arg8: memref<1x128xf32, #tpu.memory_space<vmem>>, %arg9: memref<1x1x4x4x128xf32, #tpu.memory_space<vmem>>) attributes {dimension_semantics = [#tpu.dimension_semantics<parallel>, #tpu.dimension_semantics<parallel>, #tpu.dimension_semantics<parallel>], iteration_bounds = array<i64: 2, 4, 1>, scalar_prefetch = 0 : i64, scratch_operands = 0 : i64, tpu.core_type = #tpu.core_type<tc>, window_params = [{transform_indices = @transform_0, window_bounds = array<i64: 1, 1, 1, 4, 1, 4, 64>}, {transform_indices = @transform_1, window_bounds = array<i64: 1, 1, 1, 4, 1, 4, 64>}, {transform_indices = @transform_2, window_bounds = array<i64: 1, 1, 1, 4, 1, 4, 64>}, {transform_indices = @transform_3, window_bounds = array<i64: 1, 1, 1, 4, 1, 4, 64>}, {pipeline_mode = #tpu.pipeline_mode<synchronous>, transform_indices = @transform_4, window_bounds = array<i64: 4, 64, 128>}, {pipeline_mode = #tpu.pipeline_mode<synchronous>, transform_indices = @transform_5, window_bounds = array<i64: 1, 128>}, {transform_indices = @transform_6, window_bounds = array<i64: 1, 1, 4, 4, 128>}]} {
    %c0_i32 = arith.constant 0 : i32
    %c4_i32 = arith.constant 4 : i32
    %0 = arith.addi %c0_i32, %c4_i32 : i32
    %c1_i32 = arith.constant 1 : i32
    scf.for %arg10 = %c0_i32 to %0 step %c1_i32  : i32 {
      %c0 = arith.constant 0 : index
      %c0_1 = arith.constant 0 : index
      %c0_2 = arith.constant 0 : index
      %1 = arith.index_cast %arg10 : i32 to index
      %c0_3 = arith.constant 0 : index
      %c0_4 = arith.constant 0 : index
      %c0_5 = arith.constant 0 : index
      %2 = vector.load %arg3[%c0, %c0_1, %c0_2, %1, %c0_3, %c0_4, %c0_5] : memref<1x1x1x4x1x4x64xf32, #tpu.memory_space<vmem>>, vector<1x1x1x1x1x4x64xf32>
      %3 = vector.shape_cast %2 : vector<1x1x1x1x1x4x64xf32> to vector<4x64xf32>
      %c0_6 = arith.constant 0 : index
      %c0_7 = arith.constant 0 : index
      %c0_8 = arith.constant 0 : index
      %4 = arith.index_cast %arg10 : i32 to index
      %c0_9 = arith.constant 0 : index
      %c0_10 = arith.constant 0 : index
      %c0_11 = arith.constant 0 : index
      %5 = vector.load %arg4[%c0_6, %c0_7, %c0_8, %4, %c0_9, %c0_10, %c0_11] : memref<1x1x1x4x1x4x64xf32, #tpu.memory_space<vmem>>, vector<1x1x1x1x1x4x64xf32>
      %6 = vector.shape_cast %5 : vector<1x1x1x1x1x4x64xf32> to vector<4x64xf32>
      %c0_12 = arith.constant 0 : index
      %c0_13 = arith.constant 0 : index
      %c0_14 = arith.constant 0 : index
      %7 = arith.index_cast %arg10 : i32 to index
      %c0_15 = arith.constant 0 : index
      %c0_16 = arith.constant 0 : index
      %c0_17 = arith.constant 0 : index
      %8 = vector.load %arg5[%c0_12, %c0_13, %c0_14, %7, %c0_15, %c0_16, %c0_17] : memref<1x1x1x4x1x4x64xf32, #tpu.memory_space<vmem>>, vector<1x1x1x1x1x4x64xf32>
      %9 = vector.shape_cast %8 : vector<1x1x1x1x1x4x64xf32> to vector<4x64xf32>
      %c0_18 = arith.constant 0 : index
      %c0_19 = arith.constant 0 : index
      %c0_20 = arith.constant 0 : index
      %10 = arith.index_cast %arg10 : i32 to index
      %c0_21 = arith.constant 0 : index
      %c0_22 = arith.constant 0 : index
      %c0_23 = arith.constant 0 : index
      %11 = vector.load %arg6[%c0_18, %c0_19, %c0_20, %10, %c0_21, %c0_22, %c0_23] : memref<1x1x1x4x1x4x64xf32, #tpu.memory_space<vmem>>, vector<1x1x1x1x1x4x64xf32>
      %12 = vector.shape_cast %11 : vector<1x1x1x1x1x4x64xf32> to vector<4x64xf32>
      %cst = arith.constant dense<0.000000e+00> : vector<4xf32>
      %13 = vector.multi_reduction <add>, %3, %cst [1] : vector<4x64xf32> to vector<4xf32>
      %14 = vector.shape_cast %13 : vector<4xf32> to vector<4x1xf32>
      %cst_24 = arith.constant 0.000000e+00 : f32
      %15 = vector.broadcast %cst_24 : f32 to vector<4x1xf32>
      %16 = arith.addf %15, %14 : vector<4x1xf32>
      %cst_25 = arith.constant dense<0.000000e+00> : vector<4xf32>
      %17 = vector.multi_reduction <add>, %6, %cst_25 [1] : vector<4x64xf32> to vector<4xf32>
      %18 = vector.shape_cast %17 : vector<4xf32> to vector<4x1xf32>
      %19 = arith.addf %16, %18 : vector<4x1xf32>
      %cst_26 = arith.constant dense<0.000000e+00> : vector<4xf32>
      %20 = vector.multi_reduction <add>, %9, %cst_26 [1] : vector<4x64xf32> to vector<4xf32>
      %21 = vector.shape_cast %20 : vector<4xf32> to vector<4x1xf32>
      %22 = arith.addf %19, %21 : vector<4x1xf32>
      %cst_27 = arith.constant dense<0.000000e+00> : vector<4xf32>
      %23 = vector.multi_reduction <add>, %12, %cst_27 [1] : vector<4x64xf32> to vector<4xf32>
      %24 = vector.shape_cast %23 : vector<4xf32> to vector<4x1xf32>
      %25 = arith.addf %22, %24 : vector<4x1xf32>
      %26 = arith.mulf %3, %3 : vector<4x64xf32>
      %cst_28 = arith.constant dense<0.000000e+00> : vector<4xf32>
      %27 = vector.multi_reduction <add>, %26, %cst_28 [1] : vector<4x64xf32> to vector<4xf32>
      %28 = vector.shape_cast %27 : vector<4xf32> to vector<4x1xf32>
      %cst_29 = arith.constant 0.000000e+00 : f32
      %29 = vector.broadcast %cst_29 : f32 to vector<4x1xf32>
      %30 = arith.addf %29, %28 : vector<4x1xf32>
      %31 = arith.mulf %6, %6 : vector<4x64xf32>
      %cst_30 = arith.constant dense<0.000000e+00> : vector<4xf32>
      %32 = vector.multi_reduction <add>, %31, %cst_30 [1] : vector<4x64xf32> to vector<4xf32>
      %33 = vector.shape_cast %32 : vector<4xf32> to vector<4x1xf32>
      %34 = arith.addf %30, %33 : vector<4x1xf32>
      %35 = arith.mulf %9, %9 : vector<4x64xf32>
      %cst_31 = arith.constant dense<0.000000e+00> : vector<4xf32>
      %36 = vector.multi_reduction <add>, %35, %cst_31 [1] : vector<4x64xf32> to vector<4xf32>
      %37 = vector.shape_cast %36 : vector<4xf32> to vector<4x1xf32>
      %38 = arith.addf %34, %37 : vector<4x1xf32>
      %39 = arith.mulf %12, %12 : vector<4x64xf32>
      %cst_32 = arith.constant dense<0.000000e+00> : vector<4xf32>
      %40 = vector.multi_reduction <add>, %39, %cst_32 [1] : vector<4x64xf32> to vector<4xf32>
      %41 = vector.shape_cast %40 : vector<4xf32> to vector<4x1xf32>
      %42 = arith.addf %38, %41 : vector<4x1xf32>
      %cst_33 = arith.constant 3.906250e-03 : f32
      %43 = vector.broadcast %cst_33 : f32 to vector<4x1xf32>
      %44 = arith.mulf %25, %43 : vector<4x1xf32>
      %cst_34 = arith.constant 3.906250e-03 : f32
      %45 = vector.broadcast %cst_34 : f32 to vector<4x1xf32>
      %46 = arith.mulf %42, %45 : vector<4x1xf32>
      %47 = arith.mulf %44, %44 : vector<4x1xf32>
      %48 = arith.subf %46, %47 : vector<4x1xf32>
      %cst_35 = arith.constant 0.000000e+00 : f32
      %49 = vector.broadcast %cst_35 : f32 to vector<4x1xf32>
      %50 = arith.maximumf %48, %49 : vector<4x1xf32>
      %cst_36 = arith.constant 9.99999974E-6 : f32
      %51 = vector.broadcast %cst_36 : f32 to vector<4x1xf32>
      %52 = arith.addf %50, %51 : vector<4x1xf32>
      %53 = math.rsqrt %52 : vector<4x1xf32>
      %cst_37 = arith.constant 0.000000e+00 : f32
      %54 = vector.broadcast %cst_37 : f32 to vector<4x128xf32>
      %55 = vector.broadcast %44 : vector<4x1xf32> to vector<4x64xf32>
      %56 = arith.subf %3, %55 : vector<4x64xf32>
      %57 = vector.broadcast %53 : vector<4x1xf32> to vector<4x64xf32>
      %58 = arith.mulf %56, %57 : vector<4x64xf32>
      %59 = arith.truncf %58 : vector<4x64xf32> to vector<4x64xbf16>
      %c0_38 = arith.constant 0 : index
      %c0_39 = arith.constant 0 : index
      %c0_40 = arith.constant 0 : index
      %60 = vector.load %arg7[%c0_38, %c0_39, %c0_40] : memref<4x64x128xbf16, #tpu.memory_space<vmem>>, vector<1x64x128xbf16>
      %61 = vector.shape_cast %60 : vector<1x64x128xbf16> to vector<64x128xbf16>
      %cst_41 = arith.constant dense<0.000000e+00> : vector<4x128xf32>
      %62 = tpu.matmul %59, %61, %cst_41 {dimension_numbers = #tpu.dot_dimension_numbers<[1], [0], [0], [1], [0, 0, 1, 1], [], []>} : vector<4x64xbf16>, vector<64x128xbf16>, vector<4x128xf32> -> vector<4x128xf32>
      %63 = arith.addf %54, %62 : vector<4x128xf32>
      %64 = vector.broadcast %44 : vector<4x1xf32> to vector<4x64xf32>
      %65 = arith.subf %6, %64 : vector<4x64xf32>
      %66 = vector.broadcast %53 : vector<4x1xf32> to vector<4x64xf32>
      %67 = arith.mulf %65, %66 : vector<4x64xf32>
      %68 = arith.truncf %67 : vector<4x64xf32> to vector<4x64xbf16>
      %c1 = arith.constant 1 : index
      %c0_42 = arith.constant 0 : index
      %c0_43 = arith.constant 0 : index
      %69 = vector.load %arg7[%c1, %c0_42, %c0_43] : memref<4x64x128xbf16, #tpu.memory_space<vmem>>, vector<1x64x128xbf16>
      %70 = vector.shape_cast %69 : vector<1x64x128xbf16> to vector<64x128xbf16>
      %cst_44 = arith.constant dense<0.000000e+00> : vector<4x128xf32>
      %71 = tpu.matmul %68, %70, %cst_44 {dimension_numbers = #tpu.dot_dimension_numbers<[1], [0], [0], [1], [0, 0, 1, 1], [], []>} : vector<4x64xbf16>, vector<64x128xbf16>, vector<4x128xf32> -> vector<4x128xf32>
      %72 = arith.addf %63, %71 : vector<4x128xf32>
      %73 = vector.broadcast %44 : vector<4x1xf32> to vector<4x64xf32>
      %74 = arith.subf %9, %73 : vector<4x64xf32>
      %75 = vector.broadcast %53 : vector<4x1xf32> to vector<4x64xf32>
      %76 = arith.mulf %74, %75 : vector<4x64xf32>
      %77 = arith.truncf %76 : vector<4x64xf32> to vector<4x64xbf16>
      %c2 = arith.constant 2 : index
      %c0_45 = arith.constant 0 : index
      %c0_46 = arith.constant 0 : index
      %78 = vector.load %arg7[%c2, %c0_45, %c0_46] : memref<4x64x128xbf16, #tpu.memory_space<vmem>>, vector<1x64x128xbf16>
      %79 = vector.shape_cast %78 : vector<1x64x128xbf16> to vector<64x128xbf16>
      %cst_47 = arith.constant dense<0.000000e+00> : vector<4x128xf32>
      %80 = tpu.matmul %77, %79, %cst_47 {dimension_numbers = #tpu.dot_dimension_numbers<[1], [0], [0], [1], [0, 0, 1, 1], [], []>} : vector<4x64xbf16>, vector<64x128xbf16>, vector<4x128xf32> -> vector<4x128xf32>
      %81 = arith.addf %72, %80 : vector<4x128xf32>
      %82 = vector.broadcast %44 : vector<4x1xf32> to vector<4x64xf32>
      %83 = arith.subf %12, %82 : vector<4x64xf32>
      %84 = vector.broadcast %53 : vector<4x1xf32> to vector<4x64xf32>
      %85 = arith.mulf %83, %84 : vector<4x64xf32>
      %86 = arith.truncf %85 : vector<4x64xf32> to vector<4x64xbf16>
      %c3 = arith.constant 3 : index
      %c0_48 = arith.constant 0 : index
      %c0_49 = arith.constant 0 : index
      %87 = vector.load %arg7[%c3, %c0_48, %c0_49] : memref<4x64x128xbf16, #tpu.memory_space<vmem>>, vector<1x64x128xbf16>
      %88 = vector.shape_cast %87 : vector<1x64x128xbf16> to vector<64x128xbf16>
      %cst_50 = arith.constant dense<0.000000e+00> : vector<4x128xf32>
      %89 = tpu.matmul %86, %88, %cst_50 {dimension_numbers = #tpu.dot_dimension_numbers<[1], [0], [0], [1], [0, 0, 1, 1], [], []>} : vector<4x64xbf16>, vector<64x128xbf16>, vector<4x128xf32> -> vector<4x128xf32>
      %90 = arith.addf %81, %89 : vector<4x128xf32>
      %c0_51 = arith.constant 0 : index
      %c0_52 = arith.constant 0 : index
      %91 = vector.load %arg8[%c0_51, %c0_52] : memref<1x128xf32, #tpu.memory_space<vmem>>, vector<1x128xf32>
      %92 = vector.broadcast %91 : vector<1x128xf32> to vector<4x128xf32>
      %93 = arith.addf %90, %92 : vector<4x128xf32>
      %c0_53 = arith.constant 0 : index
      %c0_54 = arith.constant 0 : index
      %94 = arith.index_cast %arg10 : i32 to index
      %c0_55 = arith.constant 0 : index
      %c0_56 = arith.constant 0 : index
      %95 = vector.load %arg9[%c0_53, %c0_54, %94, %c0_55, %c0_56] : memref<1x1x4x4x128xf32, #tpu.memory_space<vmem>>, vector<1x1x1x4x128xf32>
      %96 = vector.shape_cast %95 : vector<1x1x1x4x128xf32> to vector<4x128xf32>
      %97 = vector.shape_cast %93 : vector<4x128xf32> to vector<1x1x1x4x128xf32>
      tpu.vector_store %arg9[%c0_53, %c0_54, %94, %c0_55, %c0_56], %97 {strides = array<i32>} : memref<1x1x4x4x128xf32, #tpu.memory_space<vmem>>, vector<1x1x1x4x128xf32>,
    }
    %c4_i32_0 = arith.constant 4 : i32
    return
  }
  func.func @transform_0(%arg0: i32, %arg1: i32, %arg2: i32) -> (i32, i32, i32, i32, i32, i32, i32) {
    %c0_i32 = arith.constant 0 : i32
    %c0_i32_0 = arith.constant 0 : i32
    %c0_i32_1 = arith.constant 0 : i32
    %c0_i32_2 = arith.constant 0 : i32
    %c0_i32_3 = arith.constant 0 : i32
    return %arg0, %arg1, %c0_i32, %arg2, %c0_i32_0, %c0_i32_1, %c0_i32_2 : i32, i32, i32, i32, i32, i32, i32
  }
  func.func @transform_1(%arg0: i32, %arg1: i32, %arg2: i32) -> (i32, i32, i32, i32, i32, i32, i32) {
    %c0_i32 = arith.constant 0 : i32
    %c1_i32 = arith.constant 1 : i32
    %c0_i32_0 = arith.constant 0 : i32
    %c0_i32_1 = arith.constant 0 : i32
    %c0_i32_2 = arith.constant 0 : i32
    return %arg0, %arg1, %c0_i32, %arg2, %c1_i32, %c0_i32_0, %c0_i32_1 : i32, i32, i32, i32, i32, i32, i32
  }
  func.func @transform_2(%arg0: i32, %arg1: i32, %arg2: i32) -> (i32, i32, i32, i32, i32, i32, i32) {
    %c1_i32 = arith.constant 1 : i32
    %c0_i32 = arith.constant 0 : i32
    %c0_i32_0 = arith.constant 0 : i32
    %c0_i32_1 = arith.constant 0 : i32
    %c0_i32_2 = arith.constant 0 : i32
    return %arg0, %arg1, %c1_i32, %arg2, %c0_i32, %c0_i32_0, %c0_i32_1 : i32, i32, i32, i32, i32, i32, i32
  }
  func.func @transform_3(%arg0: i32, %arg1: i32, %arg2: i32) -> (i32, i32, i32, i32, i32, i32, i32) {
    %c1_i32 = arith.constant 1 : i32
    %c1_i32_0 = arith.constant 1 : i32
    %c0_i32 = arith.constant 0 : i32
    %c0_i32_1 = arith.constant 0 : i32
    %c0_i32_2 = arith.constant 0 : i32
    return %arg0, %arg1, %c1_i32, %arg2, %c1_i32_0, %c0_i32, %c0_i32_1 : i32, i32, i32, i32, i32, i32, i32
  }
  func.func @transform_4(%arg0: i32, %arg1: i32, %arg2: i32) -> (i32, i32, i32) {
    %c0_i32 = arith.constant 0 : i32
    %c0_i32_0 = arith.constant 0 : i32
    %c0_i32_1 = arith.constant 0 : i32
    %c0_i32_2 = arith.constant 0 : i32
    return %c0_i32, %c0_i32_0, %c0_i32_1 : i32, i32, i32
  }
  func.func @transform_5(%arg0: i32, %arg1: i32, %arg2: i32) -> (i32, i32) {
    %c0_i32 = arith.constant 0 : i32
    %c0_i32_0 = arith.constant 0 : i32
    %c0_i32_1 = arith.constant 0 : i32
    return %c0_i32, %c0_i32_0 : i32, i32
  }
  func.func @transform_6(%arg0: i32, %arg1: i32, %arg2: i32) -> (i32, i32, i32, i32, i32) {
    %c0_i32 = arith.constant 0 : i32
    %c0_i32_0 = arith.constant 0 : i32
    %c0_i32_1 = arith.constant 0 : i32
    return %arg0, %arg1, %arg2, %c0_i32, %c0_i32_0 : i32, i32, i32, i32, i32
  }
}

</mosaic_0001>

<llo_original>
// kernel: _lambda_.1
$region0: #{_lambda_.1}
  #allocation0 [shape = 'u32[]', space=smem, size = 0x4, offset = 0x4, fixed_abs, tag = 'smem constant byte address 0x4 - core index']
  #allocation1 [shape = 'u32[144,128]{1,0:T(1,128)}', space=vmem, size = 0x12000, scoped, tag = 'internal scratch']
  %s0 = inlined_call_operand.vmem [shape: f32[2,4,2,4,2,4,64], index: 0, kind: input, shape index: {}, may-alias: {0,1,2,3}]
  %s1 = inlined_call_operand.vmem [shape: f32[2,4,2,4,2,4,64], index: 1, kind: input, shape index: {}, may-alias: {0,1,2,3}]
  %s2 = inlined_call_operand.vmem [shape: f32[2,4,2,4,2,4,64], index: 2, kind: input, shape index: {}, may-alias: {0,1,2,3}]
  %s3 = inlined_call_operand.vmem [shape: f32[2,4,2,4,2,4,64], index: 3, kind: input, shape index: {}, may-alias: {0,1,2,3}]
  %s4 = inlined_call_operand.vmem [shape: bf16[4,64,128], index: 4, kind: input, shape index: {}]
  %s5 = inlined_call_operand.vmem [shape: f32[1,128], index: 5, kind: input, shape index: {}]
  %s6 = inlined_call_operand.hbm [shape: f32[2,4,4,4,128], index: 6, kind: output, shape index: {}]
  %s7 = sld [smem:[#allocation0]]
  $region228: #{_lambda_.1} parent=0
    _
  %s9 = ssub.s32 1, %s7
  %s10 = scalar_select 0, %s9, %s7
  $region1: #{_lambda_.1} parent=0
    #allocation2 [shape = 'u8[16384]{0}', space=vmem, size = 0x4000, scoped, tag = 'input window, operand 0']
    #allocation3 [shape = 'u8[16384]{0}', space=vmem, size = 0x4000, scoped, tag = 'input window, operand 1']
    #allocation4 [shape = 'u8[16384]{0}', space=vmem, size = 0x4000, scoped, tag = 'input window, operand 2']
    #allocation5 [shape = 'u8[16384]{0}', space=vmem, size = 0x4000, scoped, tag = 'input window, operand 3']
    #allocation6 [shape = 'u8[16384]{0}', space=vmem, size = 0x4000, scoped, tag = 'output window, operand 0']
    #allocation7 [shape = 's32[2]{0}', space=sflag, size = 0x8, scoped, tag = 'scoped memory for _lambda_.1']
    %11 = vsyncpa [#allocation7], 0
    %s12 = scalar_lea.sflag [#allocation7], 1
    %13 = vsyncpa %s12, 0
    loop: start=0, step=1, limit=10
    $region2: #{_lambda_.1} parent=1 // loop_pre_header
      _
    $region3: #{_lambda_.1} parent=1 // loop_header
      %s15 = sphi 0, %s19
      %p16 = scmp.ge.s32.totalorder %s15, 10
      %s22 = sphi 0, %s41
      %s23 = sphi 0, %s37
      %s24 = sphi 0, %s33
      %s25 = sphi 0, %s22
      %s26 = sphi 0, %s23
      %s27 = sphi 0, %s24
      %s28 = sphi 0, %s25
      %s29 = sphi 0, %s26
      %s30 = sphi 0, %s27
      %s48 = sphi 0, %s50
      %s51 = sphi 0, %s48
      %s52 = sphi 0, %s51
      %s68 = sphi 0, %s52
      %s78 = sphi 0, %s80
      %s81 = sphi 0, %s78
      %s82 = sphi 0, %s81
      %s98 = sphi 0, %s82
      %s108 = sphi 0, %s110
      %s111 = sphi 0, %s108
      %s112 = sphi 0, %s111
      %s128 = sphi 0, %s112
      %s138 = sphi 0, %s140
      %s141 = sphi 0, %s138
      %s142 = sphi 0, %s141
      %s158 = sphi 0, %s142
      %s162 = sphi 0, %s162
      %s164 = sphi 0, %s162
      %s165 = sphi 0, %s164
      %s179 = sphi 0, %s165
      %s183 = sphi 0, %s183
      %s185 = sphi 0, %s183
      %s186 = sphi 0, %s185
      %s200 = sphi 0, %s186
      %s210 = sphi 0, %s212
      %s213 = sphi 0, %s210
      %s214 = sphi 0, %s213
      %s230 = sphi 0, %s214
    $region4: #{_lambda_.1} parent=1 // loop_header_branch
      %18 = sbr.rel (%p16) target = $region8
    $region5: #{_lambda_.1} parent=1 // loop_body
      %s20 = ssub.s32 %s15, 1
      %s21 = ssub.s32 %s15, 2
      %s31 = sadd.s32 1, %s24
      %p32 = scmp.ge.s32.totalorder %s31, 1
      %s33 = scalar_select %p32, 0, %s31
      %s34 = sadd.s32 1, %s23
      %s35 = scalar_select %p32, %s34, %s23
      %p36 = scmp.ge.s32.totalorder %s35, 4
      %s37 = scalar_select %p36, 0, %s35
      %s38 = sadd.s32 1, %s22
      %s39 = scalar_select %p36, %s38, %s22
      %p40 = scmp.ge.s32.totalorder %s39, 2
      %s41 = scalar_select %p40, 0, %s39
      %s42 = ssub.s32 %s22, %s41
      %s43 = ssub.s32 %s23, %s37
      %s44 = sor.u32 %s42, %s43
      %s45 = ssub.s32 %s24, %s33
      %s46 = sor.u32 %s44, %s45
      %p47 = scmp.eq.s32.totalorder %s46, 0
      %s49 = sadd.s32 %s48, 1
      %s50 = scalar_select %p47, %s48, %s49
      %p53 = pneg %p47
      %p54 = scmp.eq.s32.totalorder %s15, 7
      %p55 = por %p53, %p54
      %p56 = scmp.ne.s32.totalorder %s48, %s51
      %p57 = scmp.eq.s32.totalorder %s15, 0
      %p58 = por %p56, %p57
      %p59 = scmp.ne.s32.totalorder %s48, %s51
      %p60 = scmp.eq.s32.totalorder %s20, 7
      %p61 = por %p59, %p60
      %p62 = scmp.ne.s32.totalorder %s51, %s52
      %p63 = scmp.eq.s32.totalorder %s20, 0
      %p64 = por %p62, %p63
      %p65 = scmp.ne.s32.totalorder %s51, %s52
      %p66 = scmp.eq.s32.totalorder %s21, 7
      %p67 = por %p65, %p66
      %p69 = scmp.ne.s32.totalorder %s52, %s68
      %p70 = scmp.eq.s32.totalorder %s21, 0
      %p71 = por %p69, %p70
      %s72 = ssub.s32 %s22, %s41
      %s73 = ssub.s32 %s23, %s37
      %s74 = sor.u32 %s72, %s73
      %s75 = ssub.s32 %s24, %s33
      %s76 = sor.u32 %s74, %s75
      %p77 = scmp.eq.s32.totalorder %s76, 0
      %s79 = sadd.s32 %s78, 1
      %s80 = scalar_select %p77, %s78, %s79
      %p83 = pneg %p77
      %p84 = scmp.eq.s32.totalorder %s15, 7
      %p85 = por %p83, %p84
      %p86 = scmp.ne.s32.totalorder %s78, %s81
      %p87 = scmp.eq.s32.totalorder %s15, 0
      %p88 = por %p86, %p87
      %p89 = scmp.ne.s32.totalorder %s78, %s81
      %p90 = scmp.eq.s32.totalorder %s20, 7
      %p91 = por %p89, %p90
      %p92 = scmp.ne.s32.totalorder %s81, %s82
      %p93 = scmp.eq.s32.totalorder %s20, 0
      %p94 = por %p92, %p93
      %p95 = scmp.ne.s32.totalorder %s81, %s82
      %p96 = scmp.eq.s32.totalorder %s21, 7
      %p97 = por %p95, %p96
      %p99 = scmp.ne.s32.totalorder %s82, %s98
      %p100 = scmp.eq.s32.totalorder %s21, 0
      %p101 = por %p99, %p100
      %s102 = ssub.s32 %s22, %s41
      %s103 = ssub.s32 %s23, %s37
      %s104 = sor.u32 %s102, %s103
      %s105 = ssub.s32 %s24, %s33
      %s106 = sor.u32 %s104, %s105
      %p107 = scmp.eq.s32.totalorder %s106, 0
      %s109 = sadd.s32 %s108, 1
      %s110 = scalar_select %p107, %s108, %s109
      %p113 = pneg %p107
      %p114 = scmp.eq.s32.totalorder %s15, 7
      %p115 = por %p113, %p114
      %p116 = scmp.ne.s32.totalorder %s108, %s111
      %p117 = scmp.eq.s32.totalorder %s15, 0
      %p118 = por %p116, %p117
      %p119 = scmp.ne.s32.totalorder %s108, %s111
      %p120 = scmp.eq.s32.totalorder %s20, 7
      %p121 = por %p119, %p120
      %p122 = scmp.ne.s32.totalorder %s111, %s112
      %p123 = scmp.eq.s32.totalorder %s20, 0
      %p124 = por %p122, %p123
      %p125 = scmp.ne.s32.totalorder %s111, %s112
      %p126 = scmp.eq.s32.totalorder %s21, 7
      %p127 = por %p125, %p126
      %p129 = scmp.ne.s32.totalorder %s112, %s128
      %p130 = scmp.eq.s32.totalorder %s21, 0
      %p131 = por %p129, %p130
      %s132 = ssub.s32 %s22, %s41
      %s133 = ssub.s32 %s23, %s37
      %s134 = sor.u32 %s132, %s133
      %s135 = ssub.s32 %s24, %s33
      %s136 = sor.u32 %s134, %s135
      %p137 = scmp.eq.s32.totalorder %s136, 0
      %s139 = sadd.s32 %s138, 1
      %s140 = scalar_select %p137, %s138, %s139
      %p143 = pneg %p137
      %p144 = scmp.eq.s32.totalorder %s15, 7
      %p145 = por %p143, %p144
      %p146 = scmp.ne.s32.totalorder %s138, %s141
      %p147 = scmp.eq.s32.totalorder %s15, 0
      %p148 = por %p146, %p147
      %p149 = scmp.ne.s32.totalorder %s138, %s141
      %p150 = scmp.eq.s32.totalorder %s20, 7
      %p151 = por %p149, %p150
      %p152 = scmp.ne.s32.totalorder %s141, %s142
      %p153 = scmp.eq.s32.totalorder %s20, 0
      %p154 = por %p152, %p153
      %p155 = scmp.ne.s32.totalorder %s141, %s142
      %p156 = scmp.eq.s32.totalorder %s21, 7
      %p157 = por %p155, %p156
      %p159 = scmp.ne.s32.totalorder %s142, %s158
      %p160 = scmp.eq.s32.totalorder %s21, 0
      %p161 = por %p159, %p160
      %s163 = sadd.s32 %s162, 1
      %p166 = scmp.eq.s32.totalorder %s15, 7
      %p167 = scmp.ne.s32.totalorder %s162, %s164
      %p168 = scmp.eq.s32.totalorder %s15, 0
      %p169 = por %p167, %p168
      %p170 = scmp.ne.s32.totalorder %s162, %s164
      %p171 = scmp.eq.s32.totalorder %s20, 7
      %p172 = por %p170, %p171
      %p173 = scmp.ne.s32.totalorder %s164, %s165
      %p174 = scmp.eq.s32.totalorder %s20, 0
      %p175 = por %p173, %p174
      %p176 = scmp.ne.s32.totalorder %s164, %s165
      %p177 = scmp.eq.s32.totalorder %s21, 7
      %p178 = por %p176, %p177
      %p180 = scmp.ne.s32.totalorder %s165, %s179
      %p181 = scmp.eq.s32.totalorder %s21, 0
      %p182 = por %p180, %p181
      %s184 = sadd.s32 %s183, 1
      %p187 = scmp.eq.s32.totalorder %s15, 7
      %p188 = scmp.ne.s32.totalorder %s183, %s185
      %p189 = scmp.eq.s32.totalorder %s15, 0
      %p190 = por %p188, %p189
      %p191 = scmp.ne.s32.totalorder %s183, %s185
      %p192 = scmp.eq.s32.totalorder %s20, 7
      %p193 = por %p191, %p192
      %p194 = scmp.ne.s32.totalorder %s185, %s186
      %p195 = scmp.eq.s32.totalorder %s20, 0
      %p196 = por %p194, %p195
      %p197 = scmp.ne.s32.totalorder %s185, %s186
      %p198 = scmp.eq.s32.totalorder %s21, 7
      %p199 = por %p197, %p198
      %p201 = scmp.ne.s32.totalorder %s186, %s200
      %p202 = scmp.eq.s32.totalorder %s21, 0
      %p203 = por %p201, %p202
      %s204 = ssub.s32 %s22, %s41
      %s205 = ssub.s32 %s23, %s37
      %s206 = sor.u32 %s204, %s205
      %s207 = ssub.s32 %s24, %s33
      %s208 = sor.u32 %s206, %s207
      %p209 = scmp.eq.s32.totalorder %s208, 0
      %s211 = sadd.s32 %s210, 1
      %s212 = scalar_select %p209, %s210, %s211
      %p215 = pneg %p209
      %p216 = scmp.eq.s32.totalorder %s15, 7
      %p217 = por %p215, %p216
      %p218 = scmp.ne.s32.totalorder %s210, %s213
      %p219 = scmp.eq.s32.totalorder %s15, 0
      %p220 = por %p218, %p219
      %p221 = scmp.ne.s32.totalorder %s210, %s213
      %p222 = scmp.eq.s32.totalorder %s20, 7
      %p223 = por %p221, %p222
      %p224 = scmp.ne.s32.totalorder %s213, %s214
      %p225 = scmp.eq.s32.totalorder %s20, 0
      %p226 = por %p224, %p225
      %p227 = scmp.ne.s32.totalorder %s213, %s214
      %p228 = scmp.eq.s32.totalorder %s21, 7
      %p229 = por %p227, %p228
      %p231 = scmp.ne.s32.totalorder %s214, %s230
      %p232 = scmp.eq.s32.totalorder %s21, 0
      %p233 = por %p231, %p232
      %p234 = scmp.le.s32.totalorder 1, %s15
      %p235 = scmp.lt.s32.totalorder %s15, 9
      %p236 = pnand %p234, %p235
      %p237 = pneg %p236
      // Predicated region
      $region9: #{_lambda_.1} parent=5 // pred_check
        _
      $region10: #{_lambda_.1} parent=5 // pred_check_branch
        %239 = sbr.rel (%p236) target = $region12
      $region11: #{_lambda_.1} parent=5 // pred_region
        %s240 = ssub.s32 %s15, 1
        // Predicated region
        $region13: #{_lambda_.1} parent=11 // pred_check
          %p241 = pneg %p175
        $region14: #{_lambda_.1} parent=11 // pred_check_branch
          %243 = sbr.rel (%p241) target = $region16
        $region15: #{_lambda_.1} parent=11 // pred_region
          _
        $region16: #{_lambda_.1} parent=11 // pred_fallthru
          _
        // Predicated region
        $region17: #{_lambda_.1} parent=11 // pred_check
          %p244 = pneg %p196
        $region18: #{_lambda_.1} parent=11 // pred_check_branch
          %246 = sbr.rel (%p244) target = $region20
        $region19: #{_lambda_.1} parent=11 // pred_region
          _
        $region20: #{_lambda_.1} parent=11 // pred_fallthru
          _
      $region12: #{_lambda_.1} parent=5 // pred_fallthru
        _
      %p247 = scmp.lt.s32.totalorder %s15, 8
      // Predicated region
      $region21: #{_lambda_.1} parent=5 // pred_check
        %p248 = pneg %p247
      $region22: #{_lambda_.1} parent=5 // pred_check_branch
        %250 = sbr.rel (%p248) target = $region24
      $region23: #{_lambda_.1} parent=5 // pred_region
        // Predicated region
        $region25: #{_lambda_.1} parent=23 // pred_check
          %p251 = pneg %p58
        $region26: #{_lambda_.1} parent=23 // pred_check_branch
          %253 = sbr.rel (%p251) target = $region28
        $region27: #{_lambda_.1} parent=23 // pred_region
          %s254 = sand.u32 %s48, 1
          %s255 = sand.u32 %s48, 1
          %s256 = smul.addr %s255, 16
          %s257 = scalar_lea.vmem [#allocation2], %s256
          %s258 = smul.u32 4, %s24
          %s259 = smul.addr %s258, 2
          %s260 = smul.addr %s23, 16
          %s261 = sadd.s32 %s259, %s260
          %s262 = smul.addr %s22, 64
          %s263 = sadd.s32 %s261, %s262
          %s264 = smul.addr %s263, 4
          %s265 = scalar_lea.vmem %s0, %s264
          // Predicated region
          $region29: #{_lambda_.1} parent=27 // pred_check
            _
          $region30: #{_lambda_.1} parent=27 // pred_check_branch
            %267 = sbr.rel (0) target = $region32
          $region31: #{_lambda_.1} parent=27 // pred_region
            // Predicated region
            $region33: #{_lambda_.1} parent=31 // pred_check
              _
            $region34: #{_lambda_.1} parent=31 // pred_check_branch
              %269 = sbr.rel target = $region36
            $region35: #{_lambda_.1} parent=31 // pred_region
              // Predicated region
              $region48: #{_lambda_.1} parent=35 // pred_check
                _
              $region49: #{_lambda_.1} parent=35 // pred_check_branch
                %290 = sbr.rel (0) target = $region51
              $region50: #{_lambda_.1} parent=35 // pred_region
                loop: start=0, step=1, limit=1
                $region52: #{_lambda_.1} parent=50 // loop_pre_header
                  _
                $region53: #{_lambda_.1} parent=50 // loop_header
                  %s292 = sphi 0, %s296
                  %p293 = scmp.ge.s32.totalorder %s292, 1
                  %s297 = sphi %s265, %s265
                  %s298 = sphi %s257, %s257
                $region54: #{_lambda_.1} parent=50 // loop_header_branch
                  %295 = sbr.rel (%p293) target = $region58
                $region55: #{_lambda_.1} parent=50 // loop_body
                  _
                $region56: #{_lambda_.1} parent=50 // loop_footer
                  %s296 = sadd.s32 1, %s292
                $region57: #{_lambda_.1} parent=50 // loop_footer_branch
                  %291 = sbr.rel target = $region53
                $region58: #{_lambda_.1} parent=50 // loop_exit
                  _
                loop: start=0, step=1, limit=1
                $region59: #{_lambda_.1} parent=50 // loop_pre_header
                  _
                $region60: #{_lambda_.1} parent=50 // loop_header
                  %s301 = sphi 0, %s305
                  %p302 = scmp.ge.s32.totalorder %s301, 1
                  %s306 = sphi %s265, %s265
                  %s307 = sphi %s257, %s257
                $region61: #{_lambda_.1} parent=50 // loop_header_branch
                  %304 = sbr.rel (%p302) target = $region65
                $region62: #{_lambda_.1} parent=50 // loop_body
                  %v308 = vld [vmem:[%s306] sm:$0xf]
                  %309 = vst [vmem:[%s307] sm:$0xf] %v308
                  %v310 = vld [vmem:[%s306 + $0x8] sm:$0xf]
                  %311 = vst [vmem:[%s307 + $0x4] sm:$0xf] %v310
                  %v312 = vld [vmem:[%s306 + $0x10] sm:$0xf]
                  %313 = vst [vmem:[%s307 + $0x8] sm:$0xf] %v312
                  %v314 = vld [vmem:[%s306 + $0x18] sm:$0xf]
                  %315 = vst [vmem:[%s307 + $0xc] sm:$0xf] %v314
                $region63: #{_lambda_.1} parent=50 // loop_footer
                  %s305 = sadd.s32 1, %s301
                $region64: #{_lambda_.1} parent=50 // loop_footer_branch
                  %300 = sbr.rel target = $region60
                $region65: #{_lambda_.1} parent=50 // loop_exit
                  _
              $region51: #{_lambda_.1} parent=35 // pred_fallthru
                _
            $region36: #{_lambda_.1} parent=31 // pred_fallthru
              _
            // Predicated region
            $region37: #{_lambda_.1} parent=31 // pred_check
              _
            $region38: #{_lambda_.1} parent=31 // pred_check_branch
              %271 = sbr.rel (0) target = $region40
            $region39: #{_lambda_.1} parent=31 // pred_region
              loop: start=0, step=1, limit=1
              $region41: #{_lambda_.1} parent=39 // loop_pre_header
                _
              $region42: #{_lambda_.1} parent=39 // loop_header
                %s274 = sphi 0, %s278
                %p275 = scmp.ge.s32.totalorder %s274, 1
                %s279 = sphi %s265, %s265
                %s280 = sphi %s257, %s257
              $region43: #{_lambda_.1} parent=39 // loop_header_branch
                %277 = sbr.rel (%p275) target = $region47
              $region44: #{_lambda_.1} parent=39 // loop_body
                %v281 = vld [vmem:[%s279] sm:$0xf]
                %282 = vst [vmem:[%s280] sm:$0xf] %v281
                %v283 = vld [vmem:[%s279 + $0x8] sm:$0xf]
                %284 = vst [vmem:[%s280 + $0x4] sm:$0xf] %v283
                %v285 = vld [vmem:[%s279 + $0x10] sm:$0xf]
                %286 = vst [vmem:[%s280 + $0x8] sm:$0xf] %v285
                %v287 = vld [vmem:[%s279 + $0x18] sm:$0xf]
                %288 = vst [vmem:[%s280 + $0xc] sm:$0xf] %v287
              $region45: #{_lambda_.1} parent=39 // loop_footer
                %s278 = sadd.s32 1, %s274
              $region46: #{_lambda_.1} parent=39 // loop_footer_branch
                %273 = sbr.rel target = $region42
              $region47: #{_lambda_.1} parent=39 // loop_exit
                _
            $region40: #{_lambda_.1} parent=31 // pred_fallthru
              _
          $region32: #{_lambda_.1} parent=27 // pred_fallthru
            _
          %316 = vnop
        $region28: #{_lambda_.1} parent=23 // pred_fallthru
          _
        // Predicated region
        $region66: #{_lambda_.1} parent=23 // pred_check
          %p317 = pneg %p88
        $region67: #{_lambda_.1} parent=23 // pred_check_branch
          %319 = sbr.rel (%p317) target = $region69
        $region68: #{_lambda_.1} parent=23 // pred_region
          %s320 = sand.u32 %s78, 1
          %s321 = sand.u32 %s78, 1
          %s322 = smul.addr %s321, 16
          %s323 = scalar_lea.vmem [#allocation3], %s322
          %s324 = smul.u32 4, %s24
          %s325 = smul.addr %s324, 2
          %s326 = sadd.s32 1, %s325
          %s327 = smul.addr %s23, 16
          %s328 = sadd.s32 %s326, %s327
          %s329 = smul.addr %s22, 64
          %s330 = sadd.s32 %s328, %s329
          %s331 = smul.addr %s330, 4
          %s332 = scalar_lea.vmem %s1, %s331
          // Predicated region
          $region70: #{_lambda_.1} parent=68 // pred_check
            _
          $region71: #{_lambda_.1} parent=68 // pred_check_branch
            %334 = sbr.rel (0) target = $region73
          $region72: #{_lambda_.1} parent=68 // pred_region
            // Predicated region
            $region74: #{_lambda_.1} parent=72 // pred_check
              _
            $region75: #{_lambda_.1} parent=72 // pred_check_branch
              %336 = sbr.rel target = $region77
            $region76: #{_lambda_.1} parent=72 // pred_region
              // Predicated region
              $region89: #{_lambda_.1} parent=76 // pred_check
                _
              $region90: #{_lambda_.1} parent=76 // pred_check_branch
                %357 = sbr.rel (0) target = $region92
              $region91: #{_lambda_.1} parent=76 // pred_region
                loop: start=0, step=1, limit=1
                $region93: #{_lambda_.1} parent=91 // loop_pre_header
                  _
                $region94: #{_lambda_.1} parent=91 // loop_header
                  %s359 = sphi 0, %s363
                  %p360 = scmp.ge.s32.totalorder %s359, 1
                  %s364 = sphi %s332, %s332
                  %s365 = sphi %s323, %s323
                $region95: #{_lambda_.1} parent=91 // loop_header_branch
                  %362 = sbr.rel (%p360) target = $region99
                $region96: #{_lambda_.1} parent=91 // loop_body
                  _
                $region97: #{_lambda_.1} parent=91 // loop_footer
                  %s363 = sadd.s32 1, %s359
                $region98: #{_lambda_.1} parent=91 // loop_footer_branch
                  %358 = sbr.rel target = $region94
                $region99: #{_lambda_.1} parent=91 // loop_exit
                  _
                loop: start=0, step=1, limit=1
                $region100: #{_lambda_.1} parent=91 // loop_pre_header
                  _
                $region101: #{_lambda_.1} parent=91 // loop_header
                  %s368 = sphi 0, %s372
                  %p369 = scmp.ge.s32.totalorder %s368, 1
                  %s373 = sphi %s332, %s332
                  %s374 = sphi %s323, %s323
                $region102: #{_lambda_.1} parent=91 // loop_header_branch
                  %371 = sbr.rel (%p369) target = $region106
                $region103: #{_lambda_.1} parent=91 // loop_body
                  %v375 = vld [vmem:[%s373] sm:$0xf]
                  %376 = vst [vmem:[%s374] sm:$0xf] %v375
                  %v377 = vld [vmem:[%s373 + $0x8] sm:$0xf]
                  %378 = vst [vmem:[%s374 + $0x4] sm:$0xf] %v377
                  %v379 = vld [vmem:[%s373 + $0x10] sm:$0xf]
                  %380 = vst [vmem:[%s374 + $0x8] sm:$0xf] %v379
                  %v381 = vld [vmem:[%s373 + $0x18] sm:$0xf]
                  %382 = vst [vmem:[%s374 + $0xc] sm:$0xf] %v381
                $region104: #{_lambda_.1} parent=91 // loop_footer
                  %s372 = sadd.s32 1, %s368
                $region105: #{_lambda_.1} parent=91 // loop_footer_branch
                  %367 = sbr.rel target = $region101
                $region106: #{_lambda_.1} parent=91 // loop_exit
                  _
              $region92: #{_lambda_.1} parent=76 // pred_fallthru
                _
            $region77: #{_lambda_.1} parent=72 // pred_fallthru
              _
            // Predicated region
            $region78: #{_lambda_.1} parent=72 // pred_check
              _
            $region79: #{_lambda_.1} parent=72 // pred_check_branch
              %338 = sbr.rel (0) target = $region81
            $region80: #{_lambda_.1} parent=72 // pred_region
              loop: start=0, step=1, limit=1
              $region82: #{_lambda_.1} parent=80 // loop_pre_header
                _
              $region83: #{_lambda_.1} parent=80 // loop_header
                %s341 = sphi 0, %s345
                %p342 = scmp.ge.s32.totalorder %s341, 1
                %s346 = sphi %s332, %s332
                %s347 = sphi %s323, %s323
              $region84: #{_lambda_.1} parent=80 // loop_header_branch
                %344 = sbr.rel (%p342) target = $region88
              $region85: #{_lambda_.1} parent=80 // loop_body
                %v348 = vld [vmem:[%s346] sm:$0xf]
                %349 = vst [vmem:[%s347] sm:$0xf] %v348
                %v350 = vld [vmem:[%s346 + $0x8] sm:$0xf]
                %351 = vst [vmem:[%s347 + $0x4] sm:$0xf] %v350
                %v352 = vld [vmem:[%s346 + $0x10] sm:$0xf]
                %353 = vst [vmem:[%s347 + $0x8] sm:$0xf] %v352
                %v354 = vld [vmem:[%s346 + $0x18] sm:$0xf]
                %355 = vst [vmem:[%s347 + $0xc] sm:$0xf] %v354
              $region86: #{_lambda_.1} parent=80 // loop_footer
                %s345 = sadd.s32 1, %s341
              $region87: #{_lambda_.1} parent=80 // loop_footer_branch
                %340 = sbr.rel target = $region83
              $region88: #{_lambda_.1} parent=80 // loop_exit
                _
            $region81: #{_lambda_.1} parent=72 // pred_fallthru
              _
          $region73: #{_lambda_.1} parent=68 // pred_fallthru
            _
          %383 = vnop
        $region69: #{_lambda_.1} parent=23 // pred_fallthru
          _
        // Predicated region
        $region107: #{_lambda_.1} parent=23 // pred_check
          %p384 = pneg %p118
        $region108: #{_lambda_.1} parent=23 // pred_check_branch
          %386 = sbr.rel (%p384) target = $region110
        $region109: #{_lambda_.1} parent=23 // pred_region
          %s387 = sand.u32 %s108, 1
          %s388 = sand.u32 %s108, 1
          %s389 = smul.addr %s388, 16
          %s390 = scalar_lea.vmem [#allocation4], %s389
          %s391 = smul.u32 4, %s24
          %s392 = smul.addr %s391, 2
          %s393 = sadd.s32 %s392, 8
          %s394 = smul.addr %s23, 16
          %s395 = sadd.s32 %s393, %s394
          %s396 = smul.addr %s22, 64
          %s397 = sadd.s32 %s395, %s396
          %s398 = smul.addr %s397, 4
          %s399 = scalar_lea.vmem %s2, %s398
          // Predicated region
          $region111: #{_lambda_.1} parent=109 // pred_check
            _
          $region112: #{_lambda_.1} parent=109 // pred_check_branch
            %401 = sbr.rel (0) target = $region114
          $region113: #{_lambda_.1} parent=109 // pred_region
            // Predicated region
            $region115: #{_lambda_.1} parent=113 // pred_check
              _
            $region116: #{_lambda_.1} parent=113 // pred_check_branch
              %403 = sbr.rel target = $region118
            $region117: #{_lambda_.1} parent=113 // pred_region
              // Predicated region
              $region130: #{_lambda_.1} parent=117 // pred_check
                _
              $region131: #{_lambda_.1} parent=117 // pred_check_branch
                %424 = sbr.rel (0) target = $region133
              $region132: #{_lambda_.1} parent=117 // pred_region
                loop: start=0, step=1, limit=1
                $region134: #{_lambda_.1} parent=132 // loop_pre_header
                  _
                $region135: #{_lambda_.1} parent=132 // loop_header
                  %s426 = sphi 0, %s430
                  %p427 = scmp.ge.s32.totalorder %s426, 1
                  %s431 = sphi %s399, %s399
                  %s432 = sphi %s390, %s390
                $region136: #{_lambda_.1} parent=132 // loop_header_branch
                  %429 = sbr.rel (%p427) target = $region140
                $region137: #{_lambda_.1} parent=132 // loop_body
                  _
                $region138: #{_lambda_.1} parent=132 // loop_footer
                  %s430 = sadd.s32 1, %s426
                $region139: #{_lambda_.1} parent=132 // loop_footer_branch
                  %425 = sbr.rel target = $region135
                $region140: #{_lambda_.1} parent=132 // loop_exit
                  _
                loop: start=0, step=1, limit=1
                $region141: #{_lambda_.1} parent=132 // loop_pre_header
                  _
                $region142: #{_lambda_.1} parent=132 // loop_header
                  %s435 = sphi 0, %s439
                  %p436 = scmp.ge.s32.totalorder %s435, 1
                  %s440 = sphi %s399, %s399
                  %s441 = sphi %s390, %s390
                $region143: #{_lambda_.1} parent=132 // loop_header_branch
                  %438 = sbr.rel (%p436) target = $region147
                $region144: #{_lambda_.1} parent=132 // loop_body
                  %v442 = vld [vmem:[%s440] sm:$0xf]
                  %443 = vst [vmem:[%s441] sm:$0xf] %v442
                  %v444 = vld [vmem:[%s440 + $0x8] sm:$0xf]
                  %445 = vst [vmem:[%s441 + $0x4] sm:$0xf] %v444
                  %v446 = vld [vmem:[%s440 + $0x10] sm:$0xf]
                  %447 = vst [vmem:[%s441 + $0x8] sm:$0xf] %v446
                  %v448 = vld [vmem:[%s440 + $0x18] sm:$0xf]
                  %449 = vst [vmem:[%s441 + $0xc] sm:$0xf] %v448
                $region145: #{_lambda_.1} parent=132 // loop_footer
                  %s439 = sadd.s32 1, %s435
                $region146: #{_lambda_.1} parent=132 // loop_footer_branch
                  %434 = sbr.rel target = $region142
                $region147: #{_lambda_.1} parent=132 // loop_exit
                  _
              $region133: #{_lambda_.1} parent=117 // pred_fallthru
                _
            $region118: #{_lambda_.1} parent=113 // pred_fallthru
              _
            // Predicated region
            $region119: #{_lambda_.1} parent=113 // pred_check
              _
            $region120: #{_lambda_.1} parent=113 // pred_check_branch
              %405 = sbr.rel (0) target = $region122
            $region121: #{_lambda_.1} parent=113 // pred_region
              loop: start=0, step=1, limit=1
              $region123: #{_lambda_.1} parent=121 // loop_pre_header
                _
              $region124: #{_lambda_.1} parent=121 // loop_header
                %s408 = sphi 0, %s412
                %p409 = scmp.ge.s32.totalorder %s408, 1
                %s413 = sphi %s399, %s399
                %s414 = sphi %s390, %s390
              $region125: #{_lambda_.1} parent=121 // loop_header_branch
                %411 = sbr.rel (%p409) target = $region129
              $region126: #{_lambda_.1} parent=121 // loop_body
                %v415 = vld [vmem:[%s413] sm:$0xf]
                %416 = vst [vmem:[%s414] sm:$0xf] %v415
                %v417 = vld [vmem:[%s413 + $0x8] sm:$0xf]
                %418 = vst [vmem:[%s414 + $0x4] sm:$0xf] %v417
                %v419 = vld [vmem:[%s413 + $0x10] sm:$0xf]
                %420 = vst [vmem:[%s414 + $0x8] sm:$0xf] %v419
                %v421 = vld [vmem:[%s413 + $0x18] sm:$0xf]
                %422 = vst [vmem:[%s414 + $0xc] sm:$0xf] %v421
              $region127: #{_lambda_.1} parent=121 // loop_footer
                %s412 = sadd.s32 1, %s408
              $region128: #{_lambda_.1} parent=121 // loop_footer_branch
                %407 = sbr.rel target = $region124
              $region129: #{_lambda_.1} parent=121 // loop_exit
                _
            $region122: #{_lambda_.1} parent=113 // pred_fallthru
              _
          $region114: #{_lambda_.1} parent=109 // pred_fallthru
            _
          %450 = vnop
        $region110: #{_lambda_.1} parent=23 // pred_fallthru
          _
        // Predicated region
        $region148: #{_lambda_.1} parent=23 // pred_check
          %p451 = pneg %p148
        $region149: #{_lambda_.1} parent=23 // pred_check_branch
          %453 = sbr.rel (%p451) target = $region151
        $region150: #{_lambda_.1} parent=23 // pred_region
          %s454 = sand.u32 %s138, 1
          %s455 = sand.u32 %s138, 1
          %s456 = smul.addr %s455, 16
          %s457 = scalar_lea.vmem [#allocation5], %s456
          %s458 = smul.u32 4, %s24
          %s459 = smul.addr %s458, 2
          %s460 = sadd.s32 1, %s459
          %s461 = sadd.s32 %s460, 8
          %s462 = smul.addr %s23, 16
          %s463 = sadd.s32 %s461, %s462
          %s464 = smul.addr %s22, 64
          %s465 = sadd.s32 %s463, %s464
          %s466 = smul.addr %s465, 4
          %s467 = scalar_lea.vmem %s3, %s466
          // Predicated region
          $region152: #{_lambda_.1} parent=150 // pred_check
            _
          $region153: #{_lambda_.1} parent=150 // pred_check_branch
            %469 = sbr.rel (0) target = $region155
          $region154: #{_lambda_.1} parent=150 // pred_region
            // Predicated region
            $region156: #{_lambda_.1} parent=154 // pred_check
              _
            $region157: #{_lambda_.1} parent=154 // pred_check_branch
              %471 = sbr.rel target = $region159
            $region158: #{_lambda_.1} parent=154 // pred_region
              // Predicated region
              $region171: #{_lambda_.1} parent=158 // pred_check
                _
              $region172: #{_lambda_.1} parent=158 // pred_check_branch
                %492 = sbr.rel (0) target = $region174
              $region173: #{_lambda_.1} parent=158 // pred_region
                loop: start=0, step=1, limit=1
                $region175: #{_lambda_.1} parent=173 // loop_pre_header
                  _
                $region176: #{_lambda_.1} parent=173 // loop_header
                  %s494 = sphi 0, %s498
                  %p495 = scmp.ge.s32.totalorder %s494, 1
                  %s499 = sphi %s467, %s467
                  %s500 = sphi %s457, %s457
                $region177: #{_lambda_.1} parent=173 // loop_header_branch
                  %497 = sbr.rel (%p495) target = $region181
                $region178: #{_lambda_.1} parent=173 // loop_body
                  _
                $region179: #{_lambda_.1} parent=173 // loop_footer
                  %s498 = sadd.s32 1, %s494
                $region180: #{_lambda_.1} parent=173 // loop_footer_branch
                  %493 = sbr.rel target = $region176
                $region181: #{_lambda_.1} parent=173 // loop_exit
                  _
                loop: start=0, step=1, limit=1
                $region182: #{_lambda_.1} parent=173 // loop_pre_header
                  _
                $region183: #{_lambda_.1} parent=173 // loop_header
                  %s503 = sphi 0, %s507
                  %p504 = scmp.ge.s32.totalorder %s503, 1
                  %s508 = sphi %s467, %s467
                  %s509 = sphi %s457, %s457
                $region184: #{_lambda_.1} parent=173 // loop_header_branch
                  %506 = sbr.rel (%p504) target = $region188
                $region185: #{_lambda_.1} parent=173 // loop_body
                  %v510 = vld [vmem:[%s508] sm:$0xf]
                  %511 = vst [vmem:[%s509] sm:$0xf] %v510
                  %v512 = vld [vmem:[%s508 + $0x8] sm:$0xf]
                  %513 = vst [vmem:[%s509 + $0x4] sm:$0xf] %v512
                  %v514 = vld [vmem:[%s508 + $0x10] sm:$0xf]
                  %515 = vst [vmem:[%s509 + $0x8] sm:$0xf] %v514
                  %v516 = vld [vmem:[%s508 + $0x18] sm:$0xf]
                  %517 = vst [vmem:[%s509 + $0xc] sm:$0xf] %v516
                $region186: #{_lambda_.1} parent=173 // loop_footer
                  %s507 = sadd.s32 1, %s503
                $region187: #{_lambda_.1} parent=173 // loop_footer_branch
                  %502 = sbr.rel target = $region183
                $region188: #{_lambda_.1} parent=173 // loop_exit
                  _
              $region174: #{_lambda_.1} parent=158 // pred_fallthru
                _
            $region159: #{_lambda_.1} parent=154 // pred_fallthru
              _
            // Predicated region
            $region160: #{_lambda_.1} parent=154 // pred_check
              _
            $region161: #{_lambda_.1} parent=154 // pred_check_branch
              %473 = sbr.rel (0) target = $region163
            $region162: #{_lambda_.1} parent=154 // pred_region
              loop: start=0, step=1, limit=1
              $region164: #{_lambda_.1} parent=162 // loop_pre_header
                _
              $region165: #{_lambda_.1} parent=162 // loop_header
                %s476 = sphi 0, %s480
                %p477 = scmp.ge.s32.totalorder %s476, 1
                %s481 = sphi %s467, %s467
                %s482 = sphi %s457, %s457
              $region166: #{_lambda_.1} parent=162 // loop_header_branch
                %479 = sbr.rel (%p477) target = $region170
              $region167: #{_lambda_.1} parent=162 // loop_body
                %v483 = vld [vmem:[%s481] sm:$0xf]
                %484 = vst [vmem:[%s482] sm:$0xf] %v483
                %v485 = vld [vmem:[%s481 + $0x8] sm:$0xf]
                %486 = vst [vmem:[%s482 + $0x4] sm:$0xf] %v485
                %v487 = vld [vmem:[%s481 + $0x10] sm:$0xf]
                %488 = vst [vmem:[%s482 + $0x8] sm:$0xf] %v487
                %v489 = vld [vmem:[%s481 + $0x18] sm:$0xf]
                %490 = vst [vmem:[%s482 + $0xc] sm:$0xf] %v489
              $region168: #{_lambda_.1} parent=162 // loop_footer
                %s480 = sadd.s32 1, %s476
              $region169: #{_lambda_.1} parent=162 // loop_footer_branch
                %475 = sbr.rel target = $region165
              $region170: #{_lambda_.1} parent=162 // loop_exit
                _
            $region163: #{_lambda_.1} parent=154 // pred_fallthru
              _
          $region155: #{_lambda_.1} parent=150 // pred_fallthru
            _
          %518 = vnop
        $region151: #{_lambda_.1} parent=23 // pred_fallthru
          _
      $region24: #{_lambda_.1} parent=5 // pred_fallthru
        _
      %p519 = scmp.le.s32.totalorder 1, %s15
      %p520 = scmp.lt.s32.totalorder %s15, 9
      %p521 = pnand %p519, %p520
      %p522 = pneg %p521
      // Predicated region
      $region189: #{_lambda_.1} parent=5 // pred_check
        _
      $region190: #{_lambda_.1} parent=5 // pred_check_branch
        %524 = sbr.rel (%p521) target = $region192
      $region191: #{_lambda_.1} parent=5 // pred_region
        %s525 = ssub.s32 %s15, 1
        %s526 = sand.u32 %s51, 1
        %s527 = sand.u32 %s51, 1
        %s528 = smul.addr %s527, 16
        %s529 = scalar_lea.vmem [#allocation2], %s528
        // Predicated region
        $region193: #{_lambda_.1} parent=191 // pred_check
          %p530 = pneg %p64
        $region194: #{_lambda_.1} parent=191 // pred_check_branch
          %532 = sbr.rel (%p530) target = $region196
        $region195: #{_lambda_.1} parent=191 // pred_region
          _
        $region196: #{_lambda_.1} parent=191 // pred_fallthru
          _
        %s533 = sand.u32 %s81, 1
        %s534 = sand.u32 %s81, 1
        %s535 = smul.addr %s534, 16
        %s536 = scalar_lea.vmem [#allocation3], %s535
        // Predicated region
        $region197: #{_lambda_.1} parent=191 // pred_check
          %p537 = pneg %p94
        $region198: #{_lambda_.1} parent=191 // pred_check_branch
          %539 = sbr.rel (%p537) target = $region200
        $region199: #{_lambda_.1} parent=191 // pred_region
          _
        $region200: #{_lambda_.1} parent=191 // pred_fallthru
          _
        %s540 = sand.u32 %s111, 1
        %s541 = sand.u32 %s111, 1
        %s542 = smul.addr %s541, 16
        %s543 = scalar_lea.vmem [#allocation4], %s542
        // Predicated region
        $region201: #{_lambda_.1} parent=191 // pred_check
          %p544 = pneg %p124
        $region202: #{_lambda_.1} parent=191 // pred_check_branch
          %546 = sbr.rel (%p544) target = $region204
        $region203: #{_lambda_.1} parent=191 // pred_region
          _
        $region204: #{_lambda_.1} parent=191 // pred_fallthru
          _
        %s547 = sand.u32 %s141, 1
        %s548 = sand.u32 %s141, 1
        %s549 = smul.addr %s548, 16
        %s550 = scalar_lea.vmem [#allocation5], %s549
        // Predicated region
        $region205: #{_lambda_.1} parent=191 // pred_check
          %p551 = pneg %p154
        $region206: #{_lambda_.1} parent=191 // pred_check_branch
          %553 = sbr.rel (%p551) target = $region208
        $region207: #{_lambda_.1} parent=191 // pred_region
          _
        $region208: #{_lambda_.1} parent=191 // pred_fallthru
          _
        %s554 = sand.u32 %s51, 1
        %s555 = sand.u32 %s51, 1
        %s556 = smul.addr %s555, 16
        %s557 = scalar_lea.vmem [#allocation2], %s556
        %p558 = pneg %p64
        %p559 = pneg %p61
        %s560 = sand.u32 %s81, 1
        %s561 = sand.u32 %s81, 1
        %s562 = smul.addr %s561, 16
        %s563 = scalar_lea.vmem [#allocation3], %s562
        %p564 = pneg %p94
        %p565 = pneg %p91
        %s566 = sand.u32 %s111, 1
        %s567 = sand.u32 %s111, 1
        %s568 = smul.addr %s567, 16
        %s569 = scalar_lea.vmem [#allocation4], %s568
        %p570 = pneg %p124
        %p571 = pneg %p121
        %s572 = sand.u32 %s141, 1
        %s573 = sand.u32 %s141, 1
        %s574 = smul.addr %s573, 16
        %s575 = scalar_lea.vmem [#allocation5], %s574
        %p576 = pneg %p154
        %p577 = pneg %p151
        %p578 = pneg %p175
        %p579 = pneg %p172
        %p580 = pneg %p196
        %p581 = pneg %p193
        %p582 = pneg %p226
        %p583 = pneg %p223
        %s584 = sand.u32 %s213, 1
        %s585 = scalar_lea.sflag [#allocation7], %s584
        %s586 = sand.u32 %s213, 1
        %s587 = smul.addr %s586, 16
        %s588 = scalar_lea.vmem [#allocation6], %s587
        %s589 = smul.u32 4, %s27
        %s590 = smul.u32 4, %s27
        %s591 = smul.u32 4, %s27
        %s592 = smul.u32 4, %s27
        %s593 = smul.u32 4, %s27
        loop: start=0, step=1, limit=4
        $region209: #{_lambda_.1} parent=191 // loop_pre_header
          _
        $region210: #{_lambda_.1} parent=191 // loop_header
          %s596 = sphi 0, %s600
          %p597 = scmp.ge.s32.totalorder %s596, 4
        $region211: #{_lambda_.1} parent=191 // loop_header_branch
          %599 = sbr.rel (%p597) target = $region215
        $region212: #{_lambda_.1} parent=191 // loop_body
          %s601 = smul.u32 %s596, 4
          %s602 = scalar_lea.vmem %s529, %s601 [#allocation2]
          %v603 = vld [vmem:[%s602] sm:$0xf]
          %s604 = scalar_lea.vmem %s536, %s601 [#allocation3]
          %v605 = vld [vmem:[%s604] sm:$0xf]
          %s606 = scalar_lea.vmem %s543, %s601 [#allocation4]
          %v607 = vld [vmem:[%s606] sm:$0xf]
          %s608 = scalar_lea.vmem %s550, %s601 [#allocation5]
          %v609 = vld [vmem:[%s608] sm:$0xf]
          %vm610 = vcmask 519168
          %v611 = vsel %vm610, %v603, 0.0
          %612 = vadd.xlane.f32.xlu0 %v611
          %v613 = vpop.xlane.xlu0 %612
          %v614 = vadd.f32 %v613, 0.0
          %v615 = vsel %vm610, %v605, 0.0
          %616 = vadd.xlane.f32.xlu0 %v615
          %v617 = vpop.xlane.xlu0 %616
          %v618 = vadd.f32 %v614, %v617
          %v619 = vsel %vm610, %v607, 0.0
          %620 = vadd.xlane.f32.xlu0 %v619
          %v621 = vpop.xlane.xlu0 %620
          %v622 = vadd.f32 %v618, %v621
          %v623 = vsel %vm610, %v609, 0.0
          %624 = vadd.xlane.f32.xlu0 %v623
          %v625 = vpop.xlane.xlu0 %624
          %v626 = vadd.f32 %v622, %v625
          %v627 = vmul.f32 %v603, %v603
          %v628 = vsel %vm610, %v627, 0.0
          %629 = vadd.xlane.f32.xlu0 %v628
          %v630 = vpop.xlane.xlu0 %629
          %v631 = vadd.f32 %v630, 0.0
          %v632 = vmul.f32 %v605, %v605
          %v633 = vsel %vm610, %v632, 0.0
          %634 = vadd.xlane.f32.xlu0 %v633
          %v635 = vpop.xlane.xlu0 %634
          %v636 = vadd.f32 %v631, %v635
          %v637 = vmul.f32 %v607, %v607
          %v638 = vsel %vm610, %v637, 0.0
          %639 = vadd.xlane.f32.xlu0 %v638
          %v640 = vpop.xlane.xlu0 %639
          %v641 = vadd.f32 %v636, %v640
          %v642 = vmul.f32 %v609, %v609
          %v643 = vsel %vm610, %v642, 0.0
          %644 = vadd.xlane.f32.xlu0 %v643
          %v645 = vpop.xlane.xlu0 %644
          %v646 = vadd.f32 %v641, %v645
          %v647 = vmul.f32 %v626, 0.00390625
          %v648 = vmul.f32 %v646, 0.00390625
          %v649 = vmul.f32 %v647, %v647
          %v650 = vsub.f32 %v648, %v649
          %v651 = vmax.f32 %v650, 0.0
          %v652 = vadd.f32 %v651, 1e-05
          %v653 = vrsqrt.pop %v652
          %v654 = vsub.f32 %v603, %v647
          %v655 = vmul.f32 %v654, %v653
          %v656 = vpack.c.bf16 %v655, %v655
          %v657 = vld [vmem:[%s4] sm:$0xf]
          %v658 = vld [vmem:[%s4 + $0x4] sm:$0xf]
          %v659 = vld [vmem:[%s4 + $0x8] sm:$0xf]
          %v660 = vld [vmem:[%s4 + $0xc] sm:$0xf]
          %v661 = vld [vmem:[%s4 + $0x10] sm:$0xf]
          %v662 = vld [vmem:[%s4 + $0x14] sm:$0xf]
          %v663 = vld [vmem:[%s4 + $0x18] sm:$0xf]
          %v664 = vld [vmem:[%s4 + $0x1c] sm:$0xf]
          %v665 = vsub.f32 %v605, %v647
          %v666 = vmul.f32 %v665, %v653
          %v667 = vpack.c.bf16 %v666, %v666
          %s668 = scalar_lea.vmem %s4, 32
          %v669 = vld [vmem:[%s668] sm:$0xf]
          %v670 = vld [vmem:[%s668 + $0x4] sm:$0xf]
          %v671 = vld [vmem:[%s668 + $0x8] sm:$0xf]
          %v672 = vld [vmem:[%s668 + $0xc] sm:$0xf]
          %v673 = vld [vmem:[%s668 + $0x10] sm:$0xf]
          %v674 = vld [vmem:[%s668 + $0x14] sm:$0xf]
          %v675 = vld [vmem:[%s668 + $0x18] sm:$0xf]
          %v676 = vld [vmem:[%s668 + $0x1c] sm:$0xf]
          %v685 = vunpack.c.l.b16 %v669
          %v686 = vunpack.c.l.b16 %v670
          %v687 = vunpack.c.l.b16 %v671
          %v688 = vunpack.c.l.b16 %v672
          %v689 = vunpack.c.l.b16 %v673
          %v690 = vunpack.c.l.b16 %v674
          %v691 = vunpack.c.l.b16 %v675
          %v692 = vunpack.c.l.b16 %v676
          %v693 = vpack.c.b16 %v686, %v685
          %v694 = vpack.c.b16 %v688, %v687
          %v695 = vpack.c.b16 %v690, %v689
          %v696 = vpack.c.b16 %v692, %v691
          %vm701 = vcmask 523264
          %v703 = vsel %vm701, %v667, 0
          %705 = vmatprep.subr.bf16.mxu0 0
          %706 = vmatpush1.bf16.msra.mxu0 %v693
          %707 = vmatprep.subr.bf16.mxu0 0
          %708 = vmatpush1.bf16.msra.mxu0 %v694
          %709 = vmatprep.subr.bf16.mxu0 0
          %710 = vmatpush1.bf16.msra.mxu0 %v695
          %711 = vmatprep.subr.bf16.mxu0 0
          %712 = vmatpush1.bf16.msra.mxu0 %v696
          %713 = vmatprep.subr.bf16.mxu0 0
          %714 = vmatpush1.bf16.msra.mxu0 0
          %715 = vmatprep.subr.bf16.mxu0 0
          %716 = vmatpush1.bf16.msra.mxu0 0
          %717 = vmatprep.subr.bf16.mxu0 0
          %718 = vmatpush1.bf16.msra.mxu0 0
          %719 = vmatprep.subr.bf16.mxu0 0
          %720 = vmatpush1.bf16.msra.mxu0 0
          %721 = vmatprep.subr.bf16.mxu0 0
          %722 = vmatpush1.bf16.msra.mxu0 0
          %723 = vmatprep.subr.bf16.mxu0 0
          %724 = vmatpush1.bf16.msra.mxu0 0
          %725 = vmatprep.subr.bf16.mxu0 0
          %726 = vmatpush1.bf16.msra.mxu0 0
          %727 = vmatprep.subr.bf16.mxu0 0
          %728 = vmatpush1.bf16.msra.mxu0 0
          %729 = vmatprep.subr.bf16.mxu0 0
          %730 = vmatpush1.bf16.msra.mxu0 0
          %731 = vmatprep.subr.bf16.mxu0 0
          %732 = vmatpush1.bf16.msra.mxu0 0
          %733 = vmatprep.subr.bf16.mxu0 0
          %734 = vmatpush1.bf16.msra.mxu0 0
          %735 = vmatprep.subr.bf16.mxu0 0
          %736 = vmatpush1.bf16.msra.mxu0 0
          %737 = vmatprep.mubr.bf16.mxu0 0
          %738 = vmatmul.mubr.bf16.gmra.mrb[0].mxu0 %v703
          %v739 = vpop.f32.mrb[0].mxu0
          %v740 = vadd.f32 0.0, %v739
          %v741 = vpop.f32.mrb[0].mxu0
          %v742 = vpop.f32.mrb[0].mxu0
          %v743 = vpop.f32.mrb[0].mxu0
          %744 = vdwg.mxu0
          %v753 = vunpack.c.l.b16 %v657
          %v754 = vunpack.c.l.b16 %v658
          %v755 = vunpack.c.l.b16 %v659
          %v756 = vunpack.c.l.b16 %v660
          %v757 = vunpack.c.l.b16 %v661
          %v758 = vunpack.c.l.b16 %v662
          %v759 = vunpack.c.l.b16 %v663
          %v760 = vunpack.c.l.b16 %v664
          %v761 = vpack.c.b16 %v754, %v753
          %v762 = vpack.c.b16 %v756, %v755
          %v763 = vpack.c.b16 %v758, %v757
          %v764 = vpack.c.b16 %v760, %v759
          %v770 = vsel %vm701, %v656, 0
          %772 = vmatprep.subr.bf16.mxu0 0
          %773 = vmatpush1.bf16.msra.mxu0 %v761
          %774 = vmatprep.subr.bf16.mxu0 0
          %775 = vmatpush1.bf16.msra.mxu0 %v762
          %776 = vmatprep.subr.bf16.mxu0 0
          %777 = vmatpush1.bf16.msra.mxu0 %v763
          %778 = vmatprep.subr.bf16.mxu0 0
          %779 = vmatpush1.bf16.msra.mxu0 %v764
          %780 = vmatprep.subr.bf16.mxu0 0
          %781 = vmatpush1.bf16.msra.mxu0 0
          %782 = vmatprep.subr.bf16.mxu0 0
          %783 = vmatpush1.bf16.msra.mxu0 0
          %784 = vmatprep.subr.bf16.mxu0 0
          %785 = vmatpush1.bf16.msra.mxu0 0
          %786 = vmatprep.subr.bf16.mxu0 0
          %787 = vmatpush1.bf16.msra.mxu0 0
          %788 = vmatprep.subr.bf16.mxu0 0
          %789 = vmatpush1.bf16.msra.mxu0 0
          %790 = vmatprep.subr.bf16.mxu0 0
          %791 = vmatpush1.bf16.msra.mxu0 0
          %792 = vmatprep.subr.bf16.mxu0 0
          %793 = vmatpush1.bf16.msra.mxu0 0
          %794 = vmatprep.subr.bf16.mxu0 0
          %795 = vmatpush1.bf16.msra.mxu0 0
          %796 = vmatprep.subr.bf16.mxu0 0
          %797 = vmatpush1.bf16.msra.mxu0 0
          %798 = vmatprep.subr.bf16.mxu0 0
          %799 = vmatpush1.bf16.msra.mxu0 0
          %800 = vmatprep.subr.bf16.mxu0 0
          %801 = vmatpush1.bf16.msra.mxu0 0
          %802 = vmatprep.subr.bf16.mxu0 0
          %803 = vmatpush1.bf16.msra.mxu0 0
          %804 = vmatprep.mubr.bf16.mxu0 0
          %805 = vmatmul.mubr.bf16.gmra.mrb[0].mxu0 %v770
          %v806 = vpop.f32.mrb[0].mxu0
          %v807 = vadd.f32 %v740, %v806
          %v808 = vpop.f32.mrb[0].mxu0
          %v809 = vpop.f32.mrb[0].mxu0
          %v810 = vpop.f32.mrb[0].mxu0
          %811 = vdwg.mxu0
          %v812 = vsub.f32 %v607, %v647
          %v813 = vmul.f32 %v812, %v653
          %v814 = vpack.c.bf16 %v813, %v813
          %s815 = scalar_lea.vmem %s4, 64
          %v816 = vld [vmem:[%s815] sm:$0xf]
          %v817 = vld [vmem:[%s815 + $0x4] sm:$0xf]
          %v818 = vld [vmem:[%s815 + $0x8] sm:$0xf]
          %v819 = vld [vmem:[%s815 + $0xc] sm:$0xf]
          %v820 = vld [vmem:[%s815 + $0x10] sm:$0xf]
          %v821 = vld [vmem:[%s815 + $0x14] sm:$0xf]
          %v822 = vld [vmem:[%s815 + $0x18] sm:$0xf]
          %v823 = vld [vmem:[%s815 + $0x1c] sm:$0xf]
          %v832 = vunpack.c.l.b16 %v816
          %v833 = vunpack.c.l.b16 %v817
          %v834 = vunpack.c.l.b16 %v818
          %v835 = vunpack.c.l.b16 %v819
          %v836 = vunpack.c.l.b16 %v820
          %v837 = vunpack.c.l.b16 %v821
          %v838 = vunpack.c.l.b16 %v822
          %v839 = vunpack.c.l.b16 %v823
          %v840 = vpack.c.b16 %v833, %v832
          %v841 = vpack.c.b16 %v835, %v834
          %v842 = vpack.c.b16 %v837, %v836
          %v843 = vpack.c.b16 %v839, %v838
          %v849 = vsel %vm701, %v814, 0
          %851 = vmatprep.subr.bf16.mxu0 0
          %852 = vmatpush1.bf16.msra.mxu0 %v840
          %853 = vmatprep.subr.bf16.mxu0 0
          %854 = vmatpush1.bf16.msra.mxu0 %v841
          %855 = vmatprep.subr.bf16.mxu0 0
          %856 = vmatpush1.bf16.msra.mxu0 %v842
          %857 = vmatprep.subr.bf16.mxu0 0
          %858 = vmatpush1.bf16.msra.mxu0 %v843
          %859 = vmatprep.subr.bf16.mxu0 0
          %860 = vmatpush1.bf16.msra.mxu0 0
          %861 = vmatprep.subr.bf16.mxu0 0
          %862 = vmatpush1.bf16.msra.mxu0 0
          %863 = vmatprep.subr.bf16.mxu0 0
          %864 = vmatpush1.bf16.msra.mxu0 0
          %865 = vmatprep.subr.bf16.mxu0 0
          %866 = vmatpush1.bf16.msra.mxu0 0
          %867 = vmatprep.subr.bf16.mxu0 0
          %868 = vmatpush1.bf16.msra.mxu0 0
          %869 = vmatprep.subr.bf16.mxu0 0
          %870 = vmatpush1.bf16.msra.mxu0 0
          %871 = vmatprep.subr.bf16.mxu0 0
          %872 = vmatpush1.bf16.msra.mxu0 0
          %873 = vmatprep.subr.bf16.mxu0 0
          %874 = vmatpush1.bf16.msra.mxu0 0
          %875 = vmatprep.subr.bf16.mxu0 0
          %876 = vmatpush1.bf16.msra.mxu0 0
          %877 = vmatprep.subr.bf16.mxu0 0
          %878 = vmatpush1.bf16.msra.mxu0 0
          %879 = vmatprep.subr.bf16.mxu0 0
          %880 = vmatpush1.bf16.msra.mxu0 0
          %881 = vmatprep.subr.bf16.mxu0 0
          %882 = vmatpush1.bf16.msra.mxu0 0
          %883 = vmatprep.mubr.bf16.mxu0 0
          %884 = vmatmul.mubr.bf16.gmra.mrb[0].mxu0 %v849
          %v885 = vpop.f32.mrb[0].mxu0
          %v886 = vadd.f32 0.0, %v885
          %v887 = vpop.f32.mrb[0].mxu0
          %v888 = vpop.f32.mrb[0].mxu0
          %v889 = vpop.f32.mrb[0].mxu0
          %890 = vdwg.mxu0
          %v891 = vadd.f32 %v807, %v886
          %v892 = vsub.f32 %v609, %v647
          %v893 = vmul.f32 %v892, %v653
          %v894 = vpack.c.bf16 %v893, %v893
          %s895 = scalar_lea.vmem %s4, 96
          %v896 = vld [vmem:[%s895] sm:$0xf]
          %v897 = vld [vmem:[%s895 + $0x4] sm:$0xf]
          %v898 = vld [vmem:[%s895 + $0x8] sm:$0xf]
          %v899 = vld [vmem:[%s895 + $0xc] sm:$0xf]
          %v900 = vld [vmem:[%s895 + $0x10] sm:$0xf]
          %v901 = vld [vmem:[%s895 + $0x14] sm:$0xf]
          %v902 = vld [vmem:[%s895 + $0x18] sm:$0xf]
          %v903 = vld [vmem:[%s895 + $0x1c] sm:$0xf]
          %v912 = vunpack.c.l.b16 %v896
          %v913 = vunpack.c.l.b16 %v897
          %v914 = vunpack.c.l.b16 %v898
          %v915 = vunpack.c.l.b16 %v899
          %v916 = vunpack.c.l.b16 %v900
          %v917 = vunpack.c.l.b16 %v901
          %v918 = vunpack.c.l.b16 %v902
          %v919 = vunpack.c.l.b16 %v903
          %v920 = vpack.c.b16 %v913, %v912
          %v921 = vpack.c.b16 %v915, %v914
          %v922 = vpack.c.b16 %v917, %v916
          %v923 = vpack.c.b16 %v919, %v918
          %v929 = vsel %vm701, %v894, 0
          %931 = vmatprep.subr.bf16.mxu0 0
          %932 = vmatpush1.bf16.msra.mxu0 %v920
          %933 = vmatprep.subr.bf16.mxu0 0
          %934 = vmatpush1.bf16.msra.mxu0 %v921
          %935 = vmatprep.subr.bf16.mxu0 0
          %936 = vmatpush1.bf16.msra.mxu0 %v922
          %937 = vmatprep.subr.bf16.mxu0 0
          %938 = vmatpush1.bf16.msra.mxu0 %v923
          %939 = vmatprep.subr.bf16.mxu0 0
          %940 = vmatpush1.bf16.msra.mxu0 0
          %941 = vmatprep.subr.bf16.mxu0 0
          %942 = vmatpush1.bf16.msra.mxu0 0
          %943 = vmatprep.subr.bf16.mxu0 0
          %944 = vmatpush1.bf16.msra.mxu0 0
          %945 = vmatprep.subr.bf16.mxu0 0
          %946 = vmatpush1.bf16.msra.mxu0 0
          %947 = vmatprep.subr.bf16.mxu0 0
          %948 = vmatpush1.bf16.msra.mxu0 0
          %949 = vmatprep.subr.bf16.mxu0 0
          %950 = vmatpush1.bf16.msra.mxu0 0
          %951 = vmatprep.subr.bf16.mxu0 0
          %952 = vmatpush1.bf16.msra.mxu0 0
          %953 = vmatprep.subr.bf16.mxu0 0
          %954 = vmatpush1.bf16.msra.mxu0 0
          %955 = vmatprep.subr.bf16.mxu0 0
          %956 = vmatpush1.bf16.msra.mxu0 0
          %957 = vmatprep.subr.bf16.mxu0 0
          %958 = vmatpush1.bf16.msra.mxu0 0
          %959 = vmatprep.subr.bf16.mxu0 0
          %960 = vmatpush1.bf16.msra.mxu0 0
          %961 = vmatprep.subr.bf16.mxu0 0
          %962 = vmatpush1.bf16.msra.mxu0 0
          %963 = vmatprep.mubr.bf16.mxu0 0
          %964 = vmatmul.mubr.bf16.gmra.mrb[0].mxu0 %v929
          %v965 = vpop.f32.mrb[0].mxu0
          %v966 = vadd.f32 0.0, %v965
          %v967 = vpop.f32.mrb[0].mxu0
          %v968 = vpop.f32.mrb[0].mxu0
          %v969 = vpop.f32.mrb[0].mxu0
          %970 = vdwg.mxu0
          %v971 = vadd.f32 %v891, %v966
          %v972 = vld [vmem:[%s5] sm:$0x1]
          %v974 = vlaneseq
          %v975 = vshrl.u32 %v974, 7
          %v976 = vsub.s32 0, %v975
          %v977 = vrot.slane %v972, %v976
          %v979 = vadd.f32 %v971, %v977
          %s980 = scalar_lea.vmem %s588, %s601 [#allocation6]
          %981 = vst [vmem:[%s980] sm:$0xf] %v979
        $region213: #{_lambda_.1} parent=191 // loop_footer
          %s600 = sadd.s32 1, %s596
        $region214: #{_lambda_.1} parent=191 // loop_footer_branch
          %595 = sbr.rel target = $region210
        $region215: #{_lambda_.1} parent=191 // loop_exit
          _
        %s982 = sand.u32 %s213, 1
        %s983 = scalar_lea.sflag [#allocation7], %s982
        %s984 = sand.u32 %s213, 1
        %s985 = smul.addr %s984, 16
        %s986 = scalar_lea.vmem [#allocation6], %s985
        // Predicated region
        $region216: #{_lambda_.1} parent=191 // pred_check
          %p987 = pneg %p223
        $region217: #{_lambda_.1} parent=191 // pred_check_branch
          %989 = sbr.rel (%p987) target = $region219
        $region218: #{_lambda_.1} parent=191 // pred_region
          %s990 = smul.u32 4, %s27
          %s992 = ssub.s32 256, 256
          %993 = vsyncadd %s983, %s992
          %s994 = smul.addr %s26, 4
          %s995 = sadd.s32 %s990, %s994
          %s996 = smul.addr %s25, 16
          %s997 = sadd.s32 %s995, %s996
          %s998 = smul.addr %s997, 64
          %s999 = scalar_lea.hbm %s6, %s998
          %s1000 = sshll.u32 %s986, 4
          %s1001 = int_to_ptr.vmem [resolvable:$true] %s1000
          %1006 = dma.vmem_to_hbm [thread:$0]  %s1001, 256, %s999, %s983, 64, 64, 4
        $region219: #{_lambda_.1} parent=191 // pred_fallthru
          _
      $region192: #{_lambda_.1} parent=5 // pred_fallthru
        _
      %p1007 = scmp.le.s32.totalorder 2, %s15
      // Predicated region
      $region220: #{_lambda_.1} parent=5 // pred_check
        %p1008 = pneg %p1007
      $region221: #{_lambda_.1} parent=5 // pred_check_branch
        %1010 = sbr.rel (%p1008) target = $region223
      $region222: #{_lambda_.1} parent=5 // pred_region
        %s1011 = ssub.s32 %s15, 2
        // Predicated region
        $region224: #{_lambda_.1} parent=222 // pred_check
          %p1012 = pneg %p229
        $region225: #{_lambda_.1} parent=222 // pred_check_branch
          %1014 = sbr.rel (%p1012) target = $region227
        $region226: #{_lambda_.1} parent=222 // pred_region
          %s1015 = sand.u32 %s214, 1
          %s1016 = scalar_lea.sflag [#allocation7], %s1015
          %s1017 = sand.u32 %s214, 1
          %s1018 = smul.addr %s1017, 16
          %s1019 = scalar_lea.vmem [#allocation6], %s1018
          %1020 = dma.done %s1016, 256
        $region227: #{_lambda_.1} parent=222 // pred_fallthru
          _
      $region223: #{_lambda_.1} parent=5 // pred_fallthru
        _
    $region6: #{_lambda_.1} parent=1 // loop_footer
      %s19 = sadd.s32 1, %s15
    $region7: #{_lambda_.1} parent=1 // loop_footer_branch
      %14 = sbr.rel target = $region3
    $region8: #{_lambda_.1} parent=1 // loop_exit
      _
    %1021 = vsyncpa [#allocation7], 1
    %s1022 = scalar_lea.sflag [#allocation7], 1
    %1023 = vsyncpa %s1022, 1

</llo_original>
